<compile_context>
chip_gen: v5e
topology: v5e:2x2
jax: 0.10.0
libtpu: 0.0.40
codegen_flags: <defaults>
</compile_context>

<pallas_src>
import functools

import jax
import jax.numpy as jnp
from jax import lax
from jax.experimental import pallas as pl
from jax.experimental.pallas import tpu as pltpu


def _round_up(n, m):
    return ((n + m - 1) // m) * m


def _vmem_limit_bytes():
    # Generation-aware scoped-VMEM limit: half of physical VMEM, <= 64 MiB.
    # v5e/v6e (128 MiB) -> 64 MiB, v7x (64 MiB) -> 32 MiB.
    cap = 128 * 1024 * 1024
    try:
        info = pltpu.get_tpu_info()
        cap = int(getattr(info, "vmem_capacity_bytes", cap) or cap)
    except Exception:
        pass
    return int(min(cap // 2, 64 * 1024 * 1024))


# --------------------------------------------------------------------------
# Kernel 1: input projection as a tiled GEMM
#   xproj_flat = x_flat @ W_ih + (b_ih + b_hh)     (bf16 output)
# --------------------------------------------------------------------------
def proj_kernel(x_ref, wih_ref, b_ref, xp_ref):
    """x_ref: (tm, Ep) bf16   wih_ref: (Ep, tn) bf16   b_ref: (1, tn) f32
       xp_ref: (tm, tn) bf16"""
    xp_ref[...] = (
        jnp.dot(x_ref[...], wih_ref[...], preferred_element_type=jnp.float32)
        + b_ref[...]
    ).astype(xp_ref.dtype)


# --------------------------------------------------------------------------
# Kernel 2: recurrence over chunks of Tc timesteps, h kept in VMEM scratch
# --------------------------------------------------------------------------
def rnn_kernel(xp_ref, whh_ref, hlast_ref, h_ref, *, Tc, T):
    """xp_ref: (Tc, Bp, Hp) bf16   whh_ref: (Hp, Hp) bf16
       hlast_ref: (Bp, Hp) bf16    h_ref: VMEM (Bp, Hp) bf16 scratch"""
    tc = pl.program_id(0)

    @pl.when(tc == 0)
    def _():
        h_ref[...] = jnp.zeros_like(h_ref)

    mask_needed = (T % Tc) != 0  # static: only the last (padded) chunk needs it

    def step(i, h):
        # One small MXU matmul on the serial critical path (bf16 in, f32 acc).
        pre = xp_ref[i].astype(jnp.float32) + jnp.dot(
            h, whh_ref[...], preferred_element_type=jnp.float32
        )
        h_new = jnp.tanh(pre).astype(h.dtype)  # f32 tanh, bf16 state
        if not mask_needed:
            return h_new
        t_global = tc * Tc + i
        return jnp.where(t_global < T, h_new, h)

    h = lax.fori_loop(0, Tc, step, h_ref[...], unroll=True)
    h_ref[...] = h

    @pl.when(tc == pl.num_programs(0) - 1)
    def _():
        hlast_ref[...] = h


# --------------------------------------------------------------------------
# Kernel 3: final FC, tiled over vocab
# --------------------------------------------------------------------------
def fc_kernel(h_ref, wfc_ref, bfc_ref, out_ref):
    """h_ref: (Bp, Hp) bf16   wfc_ref: (Hp, tv) bf16   bfc_ref: (1, tv) f32
       out_ref: (Bp, tv) f32"""
    out_ref[...] = (
        jnp.dot(h_ref[...], wfc_ref[...], preferred_element_type=jnp.float32)
        + bfc_ref[...]
    )


# --------------------------------------------------------------------------
# Wrapper
# --------------------------------------------------------------------------
def rnn_model_forward(tokens, params, *, time_chunk=8):
    """tokens: (B, T) int32 (or (B, 1, T), mirroring the torch squeeze).
       Returns logits (B, vocab_size) float32."""
    if tokens.ndim == 3:  # mirrors `x.squeeze(1)` in the torch module
        tokens = tokens[:, 0, :]

    emb = params["embedding"]  # (V, E)
    B, T = tokens.shape
    V, E = emb.shape
    H = params["w_hh"].shape[0]

    Bp = _round_up(B, 8)
    Ep = _round_up(E, 128)
    Hp = _round_up(H, 128)
    Vp = _round_up(V, 128)
    Tc = max(1, min(time_chunk, T))
    Tp = _round_up(T, Tc)

    vmem_limit = _vmem_limit_bytes()

    # Time-major embedding gather (wrapper glue, no big transpose in HBM).
    # TODO(synk): per-token gather stays in JAX glue; an in-kernel gather would
    # need manual DMA / scalar-prefetched row indices.  When V < B*T it is
    # cheaper to precompute emb @ W_ih + b once and gather that instead.
    x = jnp.take(emb, tokens.T, axis=0)  # (T, B, E)
    x = jnp.pad(x, ((0, Tp - T), (0, Bp - B), (0, Ep - E))).astype(jnp.bfloat16)

    wih = jnp.pad(params["w_ih"].T, ((0, Ep - E), (0, Hp - H))).astype(jnp.bfloat16)
    whh = jnp.pad(params["w_hh"].T, ((0, Hp - H), (0, Hp - H))).astype(jnp.bfloat16)
    b = jnp.pad((params["b_ih"] + params["b_hh"]).reshape(1, -1),
                ((0, 0), (0, Hp - H))).astype(jnp.float32)
    wfc = jnp.pad(params["w_fc"].T, ((0, Hp - H), (0, Vp - V))).astype(jnp.bfloat16)
    bfc = jnp.pad(params["b_fc"].reshape(1, -1),
                  ((0, 0), (0, Vp - V))).astype(jnp.float32)

    # ---------- pass 1: input projection as one tiled GEMM ----------
    M = Tp * Bp                      # T folded into the GEMM M dimension
    tm = min(256, M)                 # M is always a multiple of 8
    Mp = _round_up(M, tm)
    tn = min(512, Hp)
    x_flat = jnp.pad(x.reshape(M, Ep), ((0, Mp - M), (0, 0)))

    xproj_flat = pl.pallas_call(
        proj_kernel,
        out_shape=jax.ShapeDtypeStruct((Mp, Hp), jnp.bfloat16),
        grid_spec=pltpu.PrefetchScalarGridSpec(
            num_scalar_prefetch=0,
            grid=(Mp // tm, Hp // tn),
            in_specs=[
                pl.BlockSpec((tm, Ep), lambda i, j: (i, 0)),
                pl.BlockSpec((Ep, tn), lambda i, j: (0, j)),
                pl.BlockSpec((1, tn), lambda i, j: (0, j)),
            ],
            out_specs=pl.BlockSpec((tm, tn), lambda i, j: (i, j)),
        ),
        compiler_params=pltpu.CompilerParams(
            dimension_semantics=("parallel", "parallel"),
            vmem_limit_bytes=vmem_limit,
        ),
        cost_estimate=pl.CostEstimate(
            flops=2 * Mp * Ep * Hp,
            transcendentals=0,
            bytes_accessed=Mp * Ep * 2 + Ep * Hp * 2 + Hp * 4 + Mp * Hp * 2,
        ),
    )(x_flat, wih, b)

    xproj = xproj_flat[:M].reshape(Tp, Bp, Hp)  # bf16

    # ---------- pass 2: recurrence (sequential over T-chunks) ----------
    h_last = pl.pallas_call(
        functools.partial(rnn_kernel, Tc=Tc, T=T),
        out_shape=jax.ShapeDtypeStruct((Bp, Hp), jnp.bfloat16),
        grid_spec=pltpu.PrefetchScalarGridSpec(
            num_scalar_prefetch=0,
            grid=(Tp // Tc,),
            in_specs=[
                pl.BlockSpec((Tc, Bp, Hp), lambda t: (t, 0, 0)),
                pl.BlockSpec((Hp, Hp), lambda t: (0, 0)),
            ],
            out_specs=pl.BlockSpec((Bp, Hp), lambda t: (0, 0)),
            scratch_shapes=[pltpu.VMEM((Bp, Hp), jnp.bfloat16)],
        ),
        compiler_params=pltpu.CompilerParams(
            dimension_semantics=("arbitrary",),
            vmem_limit_bytes=vmem_limit,
        ),
        cost_estimate=pl.CostEstimate(
            flops=2 * Tp * Bp * Hp * Hp,
            transcendentals=Tp * Bp * Hp,
            bytes_accessed=Tp * Bp * Hp * 2 + Hp * Hp * 2 + Bp * Hp * 2,
        ),
    )(xproj, whh)

    # ---------- pass 3: final FC, streamed & parallel over vocab ----------
    tv = min(512, Vp)
    out_p = pl.pallas_call(
        fc_kernel,
        out_shape=jax.ShapeDtypeStruct((Bp, Vp), jnp.float32),
        grid_spec=pltpu.PrefetchScalarGridSpec(
            num_scalar_prefetch=0,
            grid=(Vp // tv,),
            in_specs=[
                pl.BlockSpec((Bp, Hp), lambda j: (0, 0)),
                pl.BlockSpec((Hp, tv), lambda j: (0, j)),
                pl.BlockSpec((1, tv), lambda j: (0, j)),
            ],
            out_specs=pl.BlockSpec((Bp, tv), lambda j: (0, j)),
        ),
        compiler_params=pltpu.CompilerParams(
            dimension_semantics=("parallel",),
            vmem_limit_bytes=vmem_limit,
        ),
        cost_estimate=pl.CostEstimate(
            flops=2 * Bp * Hp * Vp,
            transcendentals=0,
            bytes_accessed=Bp * Hp * 2 + Hp * Vp * 2 + Vp * 4 + Bp * Vp * 4,
        ),
    )(h_last, wfc, bfc)

    return out_p[:B, :V]


# --------------------------------------------------------------------------
# Pure-JAX reference (matches the torch module, f32 throughout)
# --------------------------------------------------------------------------
def reference_forward(tokens, params):
    x = jnp.take(params["embedding"], tokens, axis=0)  # (B, T, E)
    B, T, _ = x.shape
    H = params["w_hh"].shape[0]
    h = jnp.zeros((B, H), jnp.float32)
    for t in range(T):
        h = jnp.tanh(x[:, t, :] @ params["w_ih"].T + params["b_ih"]
                     + h @ params["w_hh"].T + params["b_hh"])
    return h @ params["w_fc"].T + params["b_fc"]


def init_params(key, vocab_size, embedding_dim, hidden_size):
    ks = jax.random.split(key, 7)
    s = 1.0 / jnp.sqrt(hidden_size)
    return {
        "embedding": jax.random.normal(ks[0], (vocab_size, embedding_dim),
                                       jnp.float32),
        "w_ih": jax.random.uniform(ks[1], (hidden_size, embedding_dim),
                                   jnp.float32, -s, s),
        "w_hh": jax.random.uniform(ks[2], (hidden_size, hidden_size),
                                   jnp.float32, -s, s),
        "b_ih": jax.random.uniform(ks[3], (hidden_size,), jnp.float32, -s, s),
        "b_hh": jax.random.uniform(ks[4], (hidden_size,), jnp.float32, -s, s),
        "w_fc": jax.random.uniform(ks[5], (vocab_size, hidden_size),
                                   jnp.float32, -s, s),
        "b_fc": jax.random.uniform(ks[6], (vocab_size,), jnp.float32, -s, s),
    }


if __name__ == "__main__":
    vocab_size, embedding_dim, hidden_size = 64, 32, 32
    batch, seq = 2, 8

    key = jax.random.PRNGKey(0)
    k_params, k_tok = jax.random.split(key)
    params = init_params(k_params, vocab_size, embedding_dim, hidden_size)
    tokens = jax.random.randint(k_tok, (batch, seq), 0, vocab_size,
                                dtype=jnp.int32)

    fwd = jax.jit(rnn_model_forward)
    out = jax.block_until_ready(fwd(tokens, params))

    ref = reference_forward(tokens, params)
    assert out.shape == (batch, vocab_size)
    # bf16 matmul inputs / bf16 hidden state (f32 accumulate) vs f32 reference
    assert jnp.allclose(out, ref, atol=3e-2, rtol=3e-2), (
        float(jnp.max(jnp.abs(out - ref))))

    print("KERNEL_OK")
</pallas_src>

<mosaic_0001>
module attributes {stable_mosaic.version = 11 : i64} {
  func.func @proj_kernel(%arg0: i32, %arg1: i32, %arg2: memref<64x128xbf16, #tpu.memory_space<vmem>>, %arg3: memref<128x128xbf16, #tpu.memory_space<vmem>>, %arg4: memref<1x128xf32, #tpu.memory_space<vmem>>, %arg5: memref<64x128xbf16, #tpu.memory_space<vmem>>) attributes {dimension_semantics = [#tpu.dimension_semantics<parallel>, #tpu.dimension_semantics<parallel>], iteration_bounds = array<i64: 1, 1>, scalar_prefetch = 0 : i64, scratch_operands = 0 : i64, tpu.core_type = #tpu.core_type<tc>, window_params = [{transform_indices = @transform_0, window_bounds = array<i64: 64, 128>}, {transform_indices = @transform_1, window_bounds = array<i64: 128, 128>}, {transform_indices = @transform_2, window_bounds = array<i64: 1, 128>}, {transform_indices = @transform_3, window_bounds = array<i64: 64, 128>}]} {
    %c0 = arith.constant 0 : index
    %c0_0 = arith.constant 0 : index
    %0 = vector.load %arg2[%c0, %c0_0] : memref<64x128xbf16, #tpu.memory_space<vmem>>, vector<64x128xbf16>
    %c0_1 = arith.constant 0 : index
    %c0_2 = arith.constant 0 : index
    %1 = vector.load %arg3[%c0_1, %c0_2] : memref<128x128xbf16, #tpu.memory_space<vmem>>, vector<128x128xbf16>
    %cst = arith.constant dense<0.000000e+00> : vector<64x128xf32>
    %2 = tpu.matmul %0, %1, %cst {dimension_numbers = #tpu.dot_dimension_numbers<[1], [0], [0], [1], [0, 0, 1, 1], [], []>} : vector<64x128xbf16>, vector<128x128xbf16>, vector<64x128xf32> -> vector<64x128xf32>
    %c0_3 = arith.constant 0 : index
    %c0_4 = arith.constant 0 : index
    %3 = vector.load %arg4[%c0_3, %c0_4] : memref<1x128xf32, #tpu.memory_space<vmem>>, vector<1x128xf32>
    %4 = vector.broadcast %3 : vector<1x128xf32> to vector<64x128xf32>
    %5 = arith.addf %2, %4 : vector<64x128xf32>
    %6 = arith.truncf %5 : vector<64x128xf32> to vector<64x128xbf16>
    %c0_5 = arith.constant 0 : index
    %c0_6 = arith.constant 0 : index
    %7 = vector.load %arg5[%c0_5, %c0_6] : memref<64x128xbf16, #tpu.memory_space<vmem>>, vector<64x128xbf16>
    tpu.vector_store %arg5[%c0_5, %c0_6], %6 {strides = array<i32>} : memref<64x128xbf16, #tpu.memory_space<vmem>>, vector<64x128xbf16>,
    return
  }
  func.func @transform_0(%arg0: i32, %arg1: i32) -> (i32, i32) {
    %c0_i32 = arith.constant 0 : i32
    %c0_i32_0 = arith.constant 0 : i32
    return %arg0, %c0_i32 : i32, i32
  }
  func.func @transform_1(%arg0: i32, %arg1: i32) -> (i32, i32) {
    %c0_i32 = arith.constant 0 : i32
    %c0_i32_0 = arith.constant 0 : i32
    return %c0_i32, %arg1 : i32, i32
  }
  func.func @transform_2(%arg0: i32, %arg1: i32) -> (i32, i32) {
    %c0_i32 = arith.constant 0 : i32
    %c0_i32_0 = arith.constant 0 : i32
    return %c0_i32, %arg1 : i32, i32
  }
  func.func @transform_3(%arg0: i32, %arg1: i32) -> (i32, i32) {
    %c0_i32 = arith.constant 0 : i32
    return %arg0, %arg1 : i32, i32
  }
}

module attributes {stable_mosaic.version = 11 : i64} {
  func.func @rnn_kernel(%arg0: i32, %arg1: memref<8x8x128xbf16, #tpu.memory_space<vmem>>, %arg2: memref<128x128xbf16, #tpu.memory_space<vmem>>, %arg3: memref<8x128xbf16, #tpu.memory_space<vmem>>, %arg4: memref<8x128xbf16, #tpu.memory_space<vmem>>) attributes {dimension_semantics = [#tpu.dimension_semantics<arbitrary>], iteration_bounds = array<i64: 1>, scalar_prefetch = 0 : i64, scratch_operands = 1 : i64, tpu.core_type = #tpu.core_type<tc>, window_params = [{transform_indices = @transform_0, window_bounds = array<i64: 8, 8, 128>}, {pipeline_mode = #tpu.pipeline_mode<synchronous>, transform_indices = @transform_1, window_bounds = array<i64: 128, 128>}, {pipeline_mode = #tpu.pipeline_mode<synchronous>, transform_indices = @transform_2, window_bounds = array<i64: 8, 128>}]} {
    %c0_i32 = arith.constant 0 : i32
    %0 = arith.cmpi eq, %arg0, %c0_i32 : i32
    %1 = arith.extui %0 : i1 to i32
    %c0_i32_0 = arith.constant 0 : i32
    %2 = arith.cmpi ne, %1, %c0_i32_0 : i32
    scf.if %2 {
      %cst_46 = arith.constant 0.000000e+00 : bf16
      %80 = vector.broadcast %cst_46 : bf16 to vector<8x128xbf16>
      %c0_47 = arith.constant 0 : index
      %c0_48 = arith.constant 0 : index
      %81 = vector.load %arg4[%c0_47, %c0_48] : memref<8x128xbf16, #tpu.memory_space<vmem>>, vector<8x128xbf16>
      tpu.vector_store %arg4[%c0_47, %c0_48], %80 {strides = array<i32>} : memref<8x128xbf16, #tpu.memory_space<vmem>>, vector<8x128xbf16>,
    } else {
    }
    %c0 = arith.constant 0 : index
    %c0_1 = arith.constant 0 : index
    %3 = vector.load %arg4[%c0, %c0_1] : memref<8x128xbf16, #tpu.memory_space<vmem>>, vector<8x128xbf16>
    %c0_i32_2 = arith.constant 0 : i32
    %4 = arith.index_cast %c0_i32_2 : i32 to index
    %c0_3 = arith.constant 0 : index
    %c0_4 = arith.constant 0 : index
    %5 = vector.load %arg1[%4, %c0_3, %c0_4] : memref<8x8x128xbf16, #tpu.memory_space<vmem>>, vector<1x8x128xbf16>
    %6 = vector.shape_cast %5 : vector<1x8x128xbf16> to vector<8x128xbf16>
    %7 = arith.extf %6 : vector<8x128xbf16> to vector<8x128xf32>
    %c0_5 = arith.constant 0 : index
    %c0_6 = arith.constant 0 : index
    %8 = vector.load %arg2[%c0_5, %c0_6] : memref<128x128xbf16, #tpu.memory_space<vmem>>, vector<128x128xbf16>
    %cst = arith.constant dense<0.000000e+00> : vector<8x128xf32>
    %9 = tpu.matmul %3, %8, %cst {dimension_numbers = #tpu.dot_dimension_numbers<[1], [0], [0], [1], [0, 0, 1, 1], [], []>} : vector<8x128xbf16>, vector<128x128xbf16>, vector<8x128xf32> -> vector<8x128xf32>
    %10 = arith.addf %7, %9 : vector<8x128xf32>
    %11 = math.tanh %10 : vector<8x128xf32>
    %12 = arith.truncf %11 : vector<8x128xf32> to vector<8x128xbf16>
    %c1_i32 = arith.constant 1 : i32
    %13 = arith.index_cast %c1_i32 : i32 to index
    %c0_7 = arith.constant 0 : index
    %c0_8 = arith.constant 0 : index
    %14 = vector.load %arg1[%13, %c0_7, %c0_8] : memref<8x8x128xbf16, #tpu.memory_space<vmem>>, vector<1x8x128xbf16>
    %15 = vector.shape_cast %14 : vector<1x8x128xbf16> to vector<8x128xbf16>
    %16 = arith.extf %15 : vector<8x128xbf16> to vector<8x128xf32>
    %c0_9 = arith.constant 0 : index
    %c0_10 = arith.constant 0 : index
    %17 = vector.load %arg2[%c0_9, %c0_10] : memref<128x128xbf16, #tpu.memory_space<vmem>>, vector<128x128xbf16>
    %cst_11 = arith.constant dense<0.000000e+00> : vector<8x128xf32>
    %18 = tpu.matmul %12, %17, %cst_11 {dimension_numbers = #tpu.dot_dimension_numbers<[1], [0], [0], [1], [0, 0, 1, 1], [], []>} : vector<8x128xbf16>, vector<128x128xbf16>, vector<8x128xf32> -> vector<8x128xf32>
    %19 = arith.addf %16, %18 : vector<8x128xf32>
    %20 = math.tanh %19 : vector<8x128xf32>
    %21 = arith.truncf %20 : vector<8x128xf32> to vector<8x128xbf16>
    %c2_i32 = arith.constant 2 : i32
    %22 = arith.index_cast %c2_i32 : i32 to index
    %c0_12 = arith.constant 0 : index
    %c0_13 = arith.constant 0 : index
    %23 = vector.load %arg1[%22, %c0_12, %c0_13] : memref<8x8x128xbf16, #tpu.memory_space<vmem>>, vector<1x8x128xbf16>
    %24 = vector.shape_cast %23 : vector<1x8x128xbf16> to vector<8x128xbf16>
    %25 = arith.extf %24 : vector<8x128xbf16> to vector<8x128xf32>
    %c0_14 = arith.constant 0 : index
    %c0_15 = arith.constant 0 : index
    %26 = vector.load %arg2[%c0_14, %c0_15] : memref<128x128xbf16, #tpu.memory_space<vmem>>, vector<128x128xbf16>
    %cst_16 = arith.constant dense<0.000000e+00> : vector<8x128xf32>
    %27 = tpu.matmul %21, %26, %cst_16 {dimension_numbers = #tpu.dot_dimension_numbers<[1], [0], [0], [1], [0, 0, 1, 1], [], []>} : vector<8x128xbf16>, vector<128x128xbf16>, vector<8x128xf32> -> vector<8x128xf32>
    %28 = arith.addf %25, %27 : vector<8x128xf32>
    %29 = math.tanh %28 : vector<8x128xf32>
    %30 = arith.truncf %29 : vector<8x128xf32> to vector<8x128xbf16>
    %c3_i32 = arith.constant 3 : i32
    %31 = arith.index_cast %c3_i32 : i32 to index
    %c0_17 = arith.constant 0 : index
    %c0_18 = arith.constant 0 : index
    %32 = vector.load %arg1[%31, %c0_17, %c0_18] : memref<8x8x128xbf16, #tpu.memory_space<vmem>>, vector<1x8x128xbf16>
    %33 = vector.shape_cast %32 : vector<1x8x128xbf16> to vector<8x128xbf16>
    %34 = arith.extf %33 : vector<8x128xbf16> to vector<8x128xf32>
    %c0_19 = arith.constant 0 : index
    %c0_20 = arith.constant 0 : index
    %35 = vector.load %arg2[%c0_19, %c0_20] : memref<128x128xbf16, #tpu.memory_space<vmem>>, vector<128x128xbf16>
    %cst_21 = arith.constant dense<0.000000e+00> : vector<8x128xf32>
    %36 = tpu.matmul %30, %35, %cst_21 {dimension_numbers = #tpu.dot_dimension_numbers<[1], [0], [0], [1], [0, 0, 1, 1], [], []>} : vector<8x128xbf16>, vector<128x128xbf16>, vector<8x128xf32> -> vector<8x128xf32>
    %37 = arith.addf %34, %36 : vector<8x128xf32>
    %38 = math.tanh %37 : vector<8x128xf32>
    %39 = arith.truncf %38 : vector<8x128xf32> to vector<8x128xbf16>
    %c4_i32 = arith.constant 4 : i32
    %40 = arith.index_cast %c4_i32 : i32 to index
    %c0_22 = arith.constant 0 : index
    %c0_23 = arith.constant 0 : index
    %41 = vector.load %arg1[%40, %c0_22, %c0_23] : memref<8x8x128xbf16, #tpu.memory_space<vmem>>, vector<1x8x128xbf16>
    %42 = vector.shape_cast %41 : vector<1x8x128xbf16> to vector<8x128xbf16>
    %43 = arith.extf %42 : vector<8x128xbf16> to vector<8x128xf32>
    %c0_24 = arith.constant 0 : index
    %c0_25 = arith.constant 0 : index
    %44 = vector.load %arg2[%c0_24, %c0_25] : memref<128x128xbf16, #tpu.memory_space<vmem>>, vector<128x128xbf16>
    %cst_26 = arith.constant dense<0.000000e+00> : vector<8x128xf32>
    %45 = tpu.matmul %39, %44, %cst_26 {dimension_numbers = #tpu.dot_dimension_numbers<[1], [0], [0], [1], [0, 0, 1, 1], [], []>} : vector<8x128xbf16>, vector<128x128xbf16>, vector<8x128xf32> -> vector<8x128xf32>
    %46 = arith.addf %43, %45 : vector<8x128xf32>
    %47 = math.tanh %46 : vector<8x128xf32>
    %48 = arith.truncf %47 : vector<8x128xf32> to vector<8x128xbf16>
    %c5_i32 = arith.constant 5 : i32
    %49 = arith.index_cast %c5_i32 : i32 to index
    %c0_27 = arith.constant 0 : index
    %c0_28 = arith.constant 0 : index
    %50 = vector.load %arg1[%49, %c0_27, %c0_28] : memref<8x8x128xbf16, #tpu.memory_space<vmem>>, vector<1x8x128xbf16>
    %51 = vector.shape_cast %50 : vector<1x8x128xbf16> to vector<8x128xbf16>
    %52 = arith.extf %51 : vector<8x128xbf16> to vector<8x128xf32>
    %c0_29 = arith.constant 0 : index
    %c0_30 = arith.constant 0 : index
    %53 = vector.load %arg2[%c0_29, %c0_30] : memref<128x128xbf16, #tpu.memory_space<vmem>>, vector<128x128xbf16>
    %cst_31 = arith.constant dense<0.000000e+00> : vector<8x128xf32>
    %54 = tpu.matmul %48, %53, %cst_31 {dimension_numbers = #tpu.dot_dimension_numbers<[1], [0], [0], [1], [0, 0, 1, 1], [], []>} : vector<8x128xbf16>, vector<128x128xbf16>, vector<8x128xf32> -> vector<8x128xf32>
    %55 = arith.addf %52, %54 : vector<8x128xf32>
    %56 = math.tanh %55 : vector<8x128xf32>
    %57 = arith.truncf %56 : vector<8x128xf32> to vector<8x128xbf16>
    %c6_i32 = arith.constant 6 : i32
    %58 = arith.index_cast %c6_i32 : i32 to index
    %c0_32 = arith.constant 0 : index
    %c0_33 = arith.constant 0 : index
    %59 = vector.load %arg1[%58, %c0_32, %c0_33] : memref<8x8x128xbf16, #tpu.memory_space<vmem>>, vector<1x8x128xbf16>
    %60 = vector.shape_cast %59 : vector<1x8x128xbf16> to vector<8x128xbf16>
    %61 = arith.extf %60 : vector<8x128xbf16> to vector<8x128xf32>
    %c0_34 = arith.constant 0 : index
    %c0_35 = arith.constant 0 : index
    %62 = vector.load %arg2[%c0_34, %c0_35] : memref<128x128xbf16, #tpu.memory_space<vmem>>, vector<128x128xbf16>
    %cst_36 = arith.constant dense<0.000000e+00> : vector<8x128xf32>
    %63 = tpu.matmul %57, %62, %cst_36 {dimension_numbers = #tpu.dot_dimension_numbers<[1], [0], [0], [1], [0, 0, 1, 1], [], []>} : vector<8x128xbf16>, vector<128x128xbf16>, vector<8x128xf32> -> vector<8x128xf32>
    %64 = arith.addf %61, %63 : vector<8x128xf32>
    %65 = math.tanh %64 : vector<8x128xf32>
    %66 = arith.truncf %65 : vector<8x128xf32> to vector<8x128xbf16>
    %c7_i32 = arith.constant 7 : i32
    %67 = arith.index_cast %c7_i32 : i32 to index
    %c0_37 = arith.constant 0 : index
    %c0_38 = arith.constant 0 : index
    %68 = vector.load %arg1[%67, %c0_37, %c0_38] : memref<8x8x128xbf16, #tpu.memory_space<vmem>>, vector<1x8x128xbf16>
    %69 = vector.shape_cast %68 : vector<1x8x128xbf16> to vector<8x128xbf16>
    %70 = arith.extf %69 : vector<8x128xbf16> to vector<8x128xf32>
    %c0_39 = arith.constant 0 : index
    %c0_40 = arith.constant 0 : index
    %71 = vector.load %arg2[%c0_39, %c0_40] : memref<128x128xbf16, #tpu.memory_space<vmem>>, vector<128x128xbf16>
    %cst_41 = arith.constant dense<0.000000e+00> : vector<8x128xf32>
    %72 = tpu.matmul %66, %71, %cst_41 {dimension_numbers = #tpu.dot_dimension_numbers<[1], [0], [0], [1], [0, 0, 1, 1], [], []>} : vector<8x128xbf16>, vector<128x128xbf16>, vector<8x128xf32> -> vector<8x128xf32>
    %73 = arith.addf %70, %72 : vector<8x128xf32>
    %74 = math.tanh %73 : vector<8x128xf32>
    %75 = arith.truncf %74 : vector<8x128xf32> to vector<8x128xbf16>
    %c8_i32 = arith.constant 8 : i32
    %c0_42 = arith.constant 0 : index
    %c0_43 = arith.constant 0 : index
    %76 = vector.load %arg4[%c0_42, %c0_43] : memref<8x128xbf16, #tpu.memory_space<vmem>>, vector<8x128xbf16>
    tpu.vector_store %arg4[%c0_42, %c0_43], %75 {strides = array<i32>} : memref<8x128xbf16, #tpu.memory_space<vmem>>, vector<8x128xbf16>,
    %c0_i32_44 = arith.constant 0 : i32
    %77 = arith.cmpi eq, %arg0, %c0_i32_44 : i32
    %78 = arith.extui %77 : i1 to i32
    %c0_i32_45 = arith.constant 0 : i32
    %79 = arith.cmpi ne, %78, %c0_i32_45 : i32
    scf.if %79 {
      %c0_46 = arith.constant 0 : index
      %c0_47 = arith.constant 0 : index
      %80 = vector.load %arg3[%c0_46, %c0_47] : memref<8x128xbf16, #tpu.memory_space<vmem>>, vector<8x128xbf16>
      tpu.vector_store %arg3[%c0_46, %c0_47], %75 {strides = array<i32>} : memref<8x128xbf16, #tpu.memory_space<vmem>>, vector<8x128xbf16>,
    } else {
    }
    return
  }
  func.func @transform_0(%arg0: i32) -> (i32, i32, i32) {
    %c0_i32 = arith.constant 0 : i32
    %c0_i32_0 = arith.constant 0 : i32
    %c0_i32_1 = arith.constant 0 : i32
    return %arg0, %c0_i32, %c0_i32_0 : i32, i32, i32
  }
  func.func @transform_1(%arg0: i32) -> (i32, i32) {
    %c0_i32 = arith.constant 0 : i32
    %c0_i32_0 = arith.constant 0 : i32
    %c0_i32_1 = arith.constant 0 : i32
    return %c0_i32, %c0_i32_0 : i32, i32
  }
  func.func @transform_2(%arg0: i32) -> (i32, i32) {
    %c0_i32 = arith.constant 0 : i32
    %c0_i32_0 = arith.constant 0 : i32
    %c0_i32_1 = arith.constant 0 : i32
    return %c0_i32, %c0_i32_0 : i32, i32
  }
}

module attributes {stable_mosaic.version = 11 : i64} {
  func.func @fc_kernel(%arg0: i32, %arg1: memref<8x128xbf16, #tpu.memory_space<vmem>>, %arg2: memref<128x128xbf16, #tpu.memory_space<vmem>>, %arg3: memref<1x128xf32, #tpu.memory_space<vmem>>, %arg4: memref<8x128xf32, #tpu.memory_space<vmem>>) attributes {dimension_semantics = [#tpu.dimension_semantics<parallel>], iteration_bounds = array<i64: 1>, scalar_prefetch = 0 : i64, scratch_operands = 0 : i64, tpu.core_type = #tpu.core_type<tc>, window_params = [{pipeline_mode = #tpu.pipeline_mode<synchronous>, transform_indices = @transform_0, window_bounds = array<i64: 8, 128>}, {transform_indices = @transform_1, window_bounds = array<i64: 128, 128>}, {transform_indices = @transform_2, window_bounds = array<i64: 1, 128>}, {transform_indices = @transform_3, window_bounds = array<i64: 8, 128>}]} {
    %c0 = arith.constant 0 : index
    %c0_0 = arith.constant 0 : index
    %0 = vector.load %arg1[%c0, %c0_0] : memref<8x128xbf16, #tpu.memory_space<vmem>>, vector<8x128xbf16>
    %c0_1 = arith.constant 0 : index
    %c0_2 = arith.constant 0 : index
    %1 = vector.load %arg2[%c0_1, %c0_2] : memref<128x128xbf16, #tpu.memory_space<vmem>>, vector<128x128xbf16>
    %cst = arith.constant dense<0.000000e+00> : vector<8x128xf32>
    %2 = tpu.matmul %0, %1, %cst {dimension_numbers = #tpu.dot_dimension_numbers<[1], [0], [0], [1], [0, 0, 1, 1], [], []>} : vector<8x128xbf16>, vector<128x128xbf16>, vector<8x128xf32> -> vector<8x128xf32>
    %c0_3 = arith.constant 0 : index
    %c0_4 = arith.constant 0 : index
    %3 = vector.load %arg3[%c0_3, %c0_4] : memref<1x128xf32, #tpu.memory_space<vmem>>, vector<1x128xf32>
    %4 = vector.broadcast %3 : vector<1x128xf32> to vector<8x128xf32>
    %5 = arith.addf %2, %4 : vector<8x128xf32>
    %c0_5 = arith.constant 0 : index
    %c0_6 = arith.constant 0 : index
    %6 = vector.load %arg4[%c0_5, %c0_6] : memref<8x128xf32, #tpu.memory_space<vmem>>, vector<8x128xf32>
    tpu.vector_store %arg4[%c0_5, %c0_6], %5 {strides = array<i32>} : memref<8x128xf32, #tpu.memory_space<vmem>>, vector<8x128xf32>,
    return
  }
  func.func @transform_0(%arg0: i32) -> (i32, i32) {
    %c0_i32 = arith.constant 0 : i32
    %c0_i32_0 = arith.constant 0 : i32
    %c0_i32_1 = arith.constant 0 : i32
    return %c0_i32, %c0_i32_0 : i32, i32
  }
  func.func @transform_1(%arg0: i32) -> (i32, i32) {
    %c0_i32 = arith.constant 0 : i32
    %c0_i32_0 = arith.constant 0 : i32
    return %c0_i32, %arg0 : i32, i32
  }
  func.func @transform_2(%arg0: i32) -> (i32, i32) {
    %c0_i32 = arith.constant 0 : i32
    %c0_i32_0 = arith.constant 0 : i32
    return %c0_i32, %arg0 : i32, i32
  }
  func.func @transform_3(%arg0: i32) -> (i32, i32) {
    %c0_i32 = arith.constant 0 : i32
    %c0_i32_0 = arith.constant 0 : i32
    return %c0_i32, %arg0 : i32, i32
  }
}

</mosaic_0001>

<llo_original>
// kernel: rnn_model_forward.5
$region0: #{rnn_model_forward.5}
  #allocation0 [shape = 'u32[]', space=smem, size = 0x4, offset = 0x4, fixed_abs, tag = 'smem constant byte address 0x4 - core index']
  #allocation1 [shape = 'u32[72,128]{1,0:T(1,128)}', space=vmem, size = 0x9000, scoped, tag = 'internal scratch']
  %s0 = inlined_call_operand.vmem [shape: bf16[8,128], index: 0, kind: input, shape index: {}]
  %s1 = inlined_call_operand.vmem [shape: bf16[128,128], index: 1, kind: input, shape index: {}]
  %s2 = inlined_call_operand.vmem [shape: f32[1,128], index: 2, kind: input, shape index: {}]
  %s3 = inlined_call_operand.vmem [shape: f32[8,128], index: 3, kind: output, shape index: {}]
  %s4 = sld [smem:[#allocation0]]
  $region22: #{rnn_model_forward.5} parent=0
    _
  %s6 = ssub.s32 1, %s4
  %s7 = scalar_select 0, %s6, %s4
  // Predicated region
  $region2: #{rnn_model_forward.5} parent=0 // pred_check
    _
  $region3: #{rnn_model_forward.5} parent=0 // pred_check_branch
    %9 = sbr.rel (0) target = $region5
  $region4: #{rnn_model_forward.5} parent=0 // pred_region
    _
  $region5: #{rnn_model_forward.5} parent=0 // pred_fallthru
    _
  // Predicated region
  $region6: #{rnn_model_forward.5} parent=0 // pred_check
    _
  $region7: #{rnn_model_forward.5} parent=0 // pred_check_branch
    %11 = sbr.rel (0) target = $region9
  $region8: #{rnn_model_forward.5} parent=0 // pred_region
    _
  $region9: #{rnn_model_forward.5} parent=0 // pred_fallthru
    _
  // Predicated region
  $region10: #{rnn_model_forward.5} parent=0 // pred_check
    _
  $region11: #{rnn_model_forward.5} parent=0 // pred_check_branch
    %13 = sbr.rel (0) target = $region13
  $region12: #{rnn_model_forward.5} parent=0 // pred_region
    _
  $region13: #{rnn_model_forward.5} parent=0 // pred_fallthru
    _
  %v14 = vld [vmem:[%s0] sm:$0xf]
  %v15 = vld [vmem:[%s1] sm:$0xf]
  %v16 = vld [vmem:[%s1 + $0x4] sm:$0xf]
  %v17 = vld [vmem:[%s1 + $0x8] sm:$0xf]
  %v18 = vld [vmem:[%s1 + $0xc] sm:$0xf]
  %v19 = vld [vmem:[%s1 + $0x10] sm:$0xf]
  %v20 = vld [vmem:[%s1 + $0x14] sm:$0xf]
  %v21 = vld [vmem:[%s1 + $0x18] sm:$0xf]
  %v22 = vld [vmem:[%s1 + $0x1c] sm:$0xf]
  %v23 = vld [vmem:[%s1 + $0x20] sm:$0xf]
  %v24 = vld [vmem:[%s1 + $0x24] sm:$0xf]
  %v25 = vld [vmem:[%s1 + $0x28] sm:$0xf]
  %v26 = vld [vmem:[%s1 + $0x2c] sm:$0xf]
  %v27 = vld [vmem:[%s1 + $0x30] sm:$0xf]
  %v28 = vld [vmem:[%s1 + $0x34] sm:$0xf]
  %v29 = vld [vmem:[%s1 + $0x38] sm:$0xf]
  %v30 = vld [vmem:[%s1 + $0x3c] sm:$0xf]
  %v31 = vld [vmem:[%s2] sm:$0x1]
  %v33 = vperm.slane %v31, 0
  %v51 = vunpack.c.l.b16 %v15
  %v52 = vunpack.c.l.b16 %v16
  %v53 = vunpack.c.l.b16 %v17
  %v54 = vunpack.c.l.b16 %v18
  %v55 = vunpack.c.l.b16 %v19
  %v56 = vunpack.c.l.b16 %v20
  %v57 = vunpack.c.l.b16 %v21
  %v58 = vunpack.c.l.b16 %v22
  %v59 = vunpack.c.l.b16 %v23
  %v60 = vunpack.c.l.b16 %v24
  %v61 = vunpack.c.l.b16 %v25
  %v62 = vunpack.c.l.b16 %v26
  %v63 = vunpack.c.l.b16 %v27
  %v64 = vunpack.c.l.b16 %v28
  %v65 = vunpack.c.l.b16 %v29
  %v66 = vunpack.c.l.b16 %v30
  %v67 = vpack.c.b16 %v52, %v51
  %v68 = vpack.c.b16 %v54, %v53
  %v69 = vpack.c.b16 %v56, %v55
  %v70 = vpack.c.b16 %v58, %v57
  %v71 = vpack.c.b16 %v60, %v59
  %v72 = vpack.c.b16 %v62, %v61
  %v73 = vpack.c.b16 %v64, %v63
  %v74 = vpack.c.b16 %v66, %v65
  %83 = vmatpush.bf16.msra.mxu0 %v74
  %84 = vmatpush.bf16.msra.mxu0 %v73
  %85 = vmatpush.bf16.msra.mxu0 %v72
  %86 = vmatpush.bf16.msra.mxu0 %v71
  %87 = vmatpush.bf16.msra.mxu0 %v70
  %88 = vmatpush.bf16.msra.mxu0 %v69
  %89 = vmatpush.bf16.msra.mxu0 %v68
  %90 = vmatpush.bf16.msra.mxu0 %v67
  %91 = vmatmul.bf16.gmra.mxu0 %v14
  %v92 = vpop.f32.mrf.mxu0
  %v93 = vadd.f32 %v33, %v92
  %v94 = vpop.f32.mrf.mxu0
  %95 = vdwg.mxu0
  %96 = vst [vmem:[%s3] sm:$0xff] %v93
  // Predicated region
  $region14: #{rnn_model_forward.5} parent=0 // pred_check
    _
  $region15: #{rnn_model_forward.5} parent=0 // pred_check_branch
    %98 = sbr.rel (0) target = $region17
  $region16: #{rnn_model_forward.5} parent=0 // pred_region
    _
  $region17: #{rnn_model_forward.5} parent=0 // pred_fallthru
    _
  // Predicated region
  $region18: #{rnn_model_forward.5} parent=0 // pred_check
    _
  $region19: #{rnn_model_forward.5} parent=0 // pred_check_branch
    %100 = sbr.rel (0) target = $region21
  $region20: #{rnn_model_forward.5} parent=0 // pred_region
    _
  $region21: #{rnn_model_forward.5} parent=0 // pred_fallthru
    _

// kernel: rnn_model_forward.4
$region0: #{rnn_model_forward.4}
  #allocation0 [shape = 'u32[]', space=smem, size = 0x4, offset = 0x4, fixed_abs, tag = 'smem constant byte address 0x4 - core index']
  #allocation1 [shape = 'u32[72,128]{1,0:T(1,128)}', space=vmem, size = 0x9000, scoped, tag = 'internal scratch']
  #allocation2 [shape = 'bf16[8,128]{1,0:T(8,128)(2,1)}', space=vmem, size = 0x800, scoped, tag = 'scratch operand']
  %s0 = inlined_call_operand.vmem [shape: bf16[8,8,128], index: 0, kind: input, shape index: {}]
  %s1 = inlined_call_operand.vmem [shape: bf16[128,128], index: 1, kind: input, shape index: {}]
  %s2 = inlined_call_operand.vmem [shape: bf16[8,128], index: 2, kind: output, shape index: {}]
  %s3 = sld [smem:[#allocation0]]
  $region26: #{rnn_model_forward.4} parent=0
    _
  %s5 = ssub.s32 1, %s3
  %s6 = scalar_select 0, %s5, %s3
  // Predicated region
  $region2: #{rnn_model_forward.4} parent=0 // pred_check
    _
  $region3: #{rnn_model_forward.4} parent=0 // pred_check_branch
    %8 = sbr.rel (0) target = $region5
  $region4: #{rnn_model_forward.4} parent=0 // pred_region
    _
  $region5: #{rnn_model_forward.4} parent=0 // pred_fallthru
    _
  // Predicated region
  $region6: #{rnn_model_forward.4} parent=0 // pred_check
    _
  $region7: #{rnn_model_forward.4} parent=0 // pred_check_branch
    %10 = sbr.rel (0) target = $region9
  $region8: #{rnn_model_forward.4} parent=0 // pred_region
    _
  $region9: #{rnn_model_forward.4} parent=0 // pred_fallthru
    _
  %p12 = scmp.eq.s32.totalorder 0, 0
  // Predicated region
  $region10: #{rnn_model_forward.4} parent=0 // pred_check
    %p13 = pneg %p12
  $region11: #{rnn_model_forward.4} parent=0 // pred_check_branch
    %15 = sbr.rel (%p13) target = $region13
  $region12: #{rnn_model_forward.4} parent=0 // pred_region
    %16 = vst [vmem:[#allocation2] sm:$0xf] 0
  $region13: #{rnn_model_forward.4} parent=0 // pred_fallthru
    _
  %v17 = vld [vmem:[#allocation2] sm:$0xf]
  %v18 = vld [vmem:[%s0] sm:$0xf]
  %v19 = vunpack.c.l.bf16 %v18
  %v20 = vld [vmem:[%s1] sm:$0xf]
  %v21 = vld [vmem:[%s1 + $0x4] sm:$0xf]
  %v22 = vld [vmem:[%s1 + $0x8] sm:$0xf]
  %v23 = vld [vmem:[%s1 + $0xc] sm:$0xf]
  %v24 = vld [vmem:[%s1 + $0x10] sm:$0xf]
  %v25 = vld [vmem:[%s1 + $0x14] sm:$0xf]
  %v26 = vld [vmem:[%s1 + $0x18] sm:$0xf]
  %v27 = vld [vmem:[%s1 + $0x1c] sm:$0xf]
  %v28 = vld [vmem:[%s1 + $0x20] sm:$0xf]
  %v29 = vld [vmem:[%s1 + $0x24] sm:$0xf]
  %v30 = vld [vmem:[%s1 + $0x28] sm:$0xf]
  %v31 = vld [vmem:[%s1 + $0x2c] sm:$0xf]
  %v32 = vld [vmem:[%s1 + $0x30] sm:$0xf]
  %v33 = vld [vmem:[%s1 + $0x34] sm:$0xf]
  %v34 = vld [vmem:[%s1 + $0x38] sm:$0xf]
  %v35 = vld [vmem:[%s1 + $0x3c] sm:$0xf]
  %v52 = vunpack.c.l.b16 %v20
  %v53 = vunpack.c.l.b16 %v21
  %v54 = vunpack.c.l.b16 %v22
  %v55 = vunpack.c.l.b16 %v23
  %v56 = vunpack.c.l.b16 %v24
  %v57 = vunpack.c.l.b16 %v25
  %v58 = vunpack.c.l.b16 %v26
  %v59 = vunpack.c.l.b16 %v27
  %v60 = vunpack.c.l.b16 %v28
  %v61 = vunpack.c.l.b16 %v29
  %v62 = vunpack.c.l.b16 %v30
  %v63 = vunpack.c.l.b16 %v31
  %v64 = vunpack.c.l.b16 %v32
  %v65 = vunpack.c.l.b16 %v33
  %v66 = vunpack.c.l.b16 %v34
  %v67 = vunpack.c.l.b16 %v35
  %v68 = vpack.c.b16 %v53, %v52
  %v69 = vpack.c.b16 %v55, %v54
  %v70 = vpack.c.b16 %v57, %v56
  %v71 = vpack.c.b16 %v59, %v58
  %v72 = vpack.c.b16 %v61, %v60
  %v73 = vpack.c.b16 %v63, %v62
  %v74 = vpack.c.b16 %v65, %v64
  %v75 = vpack.c.b16 %v67, %v66
  %84 = vmatpush.bf16.msra.mxu0 %v75
  %85 = vmatpush.bf16.msra.mxu0 %v74
  %86 = vmatpush.bf16.msra.mxu0 %v73
  %87 = vmatpush.bf16.msra.mxu0 %v72
  %88 = vmatpush.bf16.msra.mxu0 %v71
  %89 = vmatpush.bf16.msra.mxu0 %v70
  %90 = vmatpush.bf16.msra.mxu0 %v69
  %91 = vmatpush.bf16.msra.mxu0 %v68
  %92 = vmatmul.bf16.gmra.mxu0 %v17
  %v93 = vpop.f32.mrf.mxu0
  %v94 = vadd.f32 0.0, %v93
  %v95 = vpop.f32.mrf.mxu0
  %96 = vdwg.mxu0
  %v97 = vadd.f32 %v19, %v94
  %v98 = vtanh.pop %v97
  %v99 = vpack.c.bf16 %v98, %v98
  %s100 = scalar_lea.vmem %s0, 4
  %v101 = vld [vmem:[%s100] sm:$0xf]
  %v102 = vunpack.c.l.bf16 %v101
  %103 = vmatpush.bf16.msra.mxu0 %v75
  %104 = vmatpush.bf16.msra.mxu0 %v74
  %105 = vmatpush.bf16.msra.mxu0 %v73
  %106 = vmatpush.bf16.msra.mxu0 %v72
  %107 = vmatpush.bf16.msra.mxu0 %v71
  %108 = vmatpush.bf16.msra.mxu0 %v70
  %109 = vmatpush.bf16.msra.mxu0 %v69
  %110 = vmatpush.bf16.msra.mxu0 %v68
  %111 = vmatmul.bf16.gmra.mxu0 %v99
  %v112 = vpop.f32.mrf.mxu0
  %v113 = vadd.f32 0.0, %v112
  %v114 = vpop.f32.mrf.mxu0
  %115 = vdwg.mxu0
  %v116 = vadd.f32 %v102, %v113
  %v117 = vtanh.pop %v116
  %v118 = vpack.c.bf16 %v117, %v117
  %s119 = scalar_lea.vmem %s0, 8
  %v120 = vld [vmem:[%s119] sm:$0xf]
  %v121 = vunpack.c.l.bf16 %v120
  %122 = vmatpush.bf16.msra.mxu0 %v75
  %123 = vmatpush.bf16.msra.mxu0 %v74
  %124 = vmatpush.bf16.msra.mxu0 %v73
  %125 = vmatpush.bf16.msra.mxu0 %v72
  %126 = vmatpush.bf16.msra.mxu0 %v71
  %127 = vmatpush.bf16.msra.mxu0 %v70
  %128 = vmatpush.bf16.msra.mxu0 %v69
  %129 = vmatpush.bf16.msra.mxu0 %v68
  %130 = vmatmul.bf16.gmra.mxu0 %v118
  %v131 = vpop.f32.mrf.mxu0
  %v132 = vadd.f32 0.0, %v131
  %v133 = vpop.f32.mrf.mxu0
  %134 = vdwg.mxu0
  %v135 = vadd.f32 %v121, %v132
  %v136 = vtanh.pop %v135
  %v137 = vpack.c.bf16 %v136, %v136
  %s138 = scalar_lea.vmem %s0, 12
  %v139 = vld [vmem:[%s138] sm:$0xf]
  %v140 = vunpack.c.l.bf16 %v139
  %141 = vmatpush.bf16.msra.mxu0 %v75
  %142 = vmatpush.bf16.msra.mxu0 %v74
  %143 = vmatpush.bf16.msra.mxu0 %v73
  %144 = vmatpush.bf16.msra.mxu0 %v72
  %145 = vmatpush.bf16.msra.mxu0 %v71
  %146 = vmatpush.bf16.msra.mxu0 %v70
  %147 = vmatpush.bf16.msra.mxu0 %v69
  %148 = vmatpush.bf16.msra.mxu0 %v68
  %149 = vmatmul.bf16.gmra.mxu0 %v137
  %v150 = vpop.f32.mrf.mxu0
  %v151 = vadd.f32 0.0, %v150
  %v152 = vpop.f32.mrf.mxu0
  %153 = vdwg.mxu0
  %v154 = vadd.f32 %v140, %v151
  %v155 = vtanh.pop %v154
  %v156 = vpack.c.bf16 %v155, %v155
  %s157 = scalar_lea.vmem %s0, 16
  %v158 = vld [vmem:[%s157] sm:$0xf]
  %v159 = vunpack.c.l.bf16 %v158
  %160 = vmatpush.bf16.msra.mxu0 %v75
  %161 = vmatpush.bf16.msra.mxu0 %v74
  %162 = vmatpush.bf16.msra.mxu0 %v73
  %163 = vmatpush.bf16.msra.mxu0 %v72
  %164 = vmatpush.bf16.msra.mxu0 %v71
  %165 = vmatpush.bf16.msra.mxu0 %v70
  %166 = vmatpush.bf16.msra.mxu0 %v69
  %167 = vmatpush.bf16.msra.mxu0 %v68
  %168 = vmatmul.bf16.gmra.mxu0 %v156
  %v169 = vpop.f32.mrf.mxu0
  %v170 = vadd.f32 0.0, %v169
  %v171 = vpop.f32.mrf.mxu0
  %172 = vdwg.mxu0
  %v173 = vadd.f32 %v159, %v170
  %v174 = vtanh.pop %v173
  %v175 = vpack.c.bf16 %v174, %v174
  %s176 = scalar_lea.vmem %s0, 20
  %v177 = vld [vmem:[%s176] sm:$0xf]
  %v178 = vunpack.c.l.bf16 %v177
  %179 = vmatpush.bf16.msra.mxu0 %v75
  %180 = vmatpush.bf16.msra.mxu0 %v74
  %181 = vmatpush.bf16.msra.mxu0 %v73
  %182 = vmatpush.bf16.msra.mxu0 %v72
  %183 = vmatpush.bf16.msra.mxu0 %v71
  %184 = vmatpush.bf16.msra.mxu0 %v70
  %185 = vmatpush.bf16.msra.mxu0 %v69
  %186 = vmatpush.bf16.msra.mxu0 %v68
  %187 = vmatmul.bf16.gmra.mxu0 %v175
  %v188 = vpop.f32.mrf.mxu0
  %v189 = vadd.f32 0.0, %v188
  %v190 = vpop.f32.mrf.mxu0
  %191 = vdwg.mxu0
  %v192 = vadd.f32 %v178, %v189
  %v193 = vtanh.pop %v192
  %v194 = vpack.c.bf16 %v193, %v193
  %s195 = scalar_lea.vmem %s0, 24
  %v196 = vld [vmem:[%s195] sm:$0xf]
  %v197 = vunpack.c.l.bf16 %v196
  %198 = vmatpush.bf16.msra.mxu0 %v75
  %199 = vmatpush.bf16.msra.mxu0 %v74
  %200 = vmatpush.bf16.msra.mxu0 %v73
  %201 = vmatpush.bf16.msra.mxu0 %v72
  %202 = vmatpush.bf16.msra.mxu0 %v71
  %203 = vmatpush.bf16.msra.mxu0 %v70
  %204 = vmatpush.bf16.msra.mxu0 %v69
  %205 = vmatpush.bf16.msra.mxu0 %v68
  %206 = vmatmul.bf16.gmra.mxu0 %v194
  %v207 = vpop.f32.mrf.mxu0
  %v208 = vadd.f32 0.0, %v207
  %v209 = vpop.f32.mrf.mxu0
  %210 = vdwg.mxu0
  %v211 = vadd.f32 %v197, %v208
  %v212 = vtanh.pop %v211
  %v213 = vpack.c.bf16 %v212, %v212
  %s214 = scalar_lea.vmem %s0, 28
  %v215 = vld [vmem:[%s214] sm:$0xf]
  %v216 = vunpack.c.l.bf16 %v215
  %217 = vmatpush.bf16.msra.mxu0 %v75
  %218 = vmatpush.bf16.msra.mxu0 %v74
  %219 = vmatpush.bf16.msra.mxu0 %v73
  %220 = vmatpush.bf16.msra.mxu0 %v72
  %221 = vmatpush.bf16.msra.mxu0 %v71
  %222 = vmatpush.bf16.msra.mxu0 %v70
  %223 = vmatpush.bf16.msra.mxu0 %v69
  %224 = vmatpush.bf16.msra.mxu0 %v68
  %225 = vmatmul.bf16.gmra.mxu0 %v213
  %v226 = vpop.f32.mrf.mxu0
  %v227 = vadd.f32 0.0, %v226
  %v228 = vpop.f32.mrf.mxu0
  %229 = vdwg.mxu0
  %v230 = vadd.f32 %v216, %v227
  %v231 = vtanh.pop %v230
  %v232 = vpack.c.bf16 %v231, %v231
  %233 = vst [vmem:[#allocation2] sm:$0xf] %v232
  // Predicated region
  $region14: #{rnn_model_forward.4} parent=0 // pred_check
    %p234 = pneg %p12
  $region15: #{rnn_model_forward.4} parent=0 // pred_check_branch
    %236 = sbr.rel (%p234) target = $region17
  $region16: #{rnn_model_forward.4} parent=0 // pred_region
    %237 = vst [vmem:[%s2] sm:$0xf] %v232
  $region17: #{rnn_model_forward.4} parent=0 // pred_fallthru
    _
  // Predicated region
  $region18: #{rnn_model_forward.4} parent=0 // pred_check
    _
  $region19: #{rnn_model_forward.4} parent=0 // pred_check_branch
    %239 = sbr.rel (0) target = $region21
  $region20: #{rnn_model_forward.4} parent=0 // pred_region
    _
  $region21: #{rnn_model_forward.4} parent=0 // pred_fallthru
    _
  // Predicated region
  $region22: #{rnn_model_forward.4} parent=0 // pred_check
    _
  $region23: #{rnn_model_forward.4} parent=0 // pred_check_branch
    %241 = sbr.rel (0) target = $region25
  $region24: #{rnn_model_forward.4} parent=0 // pred_region
    _
  $region25: #{rnn_model_forward.4} parent=0 // pred_fallthru
    _

// kernel: rnn_model_forward.3
$region0: #{rnn_model_forward.3}
  #allocation0 [shape = 'u32[]', space=smem, size = 0x4, offset = 0x4, fixed_abs, tag = 'smem constant byte address 0x4 - core index']
  #allocation1 [shape = 'u32[72,128]{1,0:T(1,128)}', space=vmem, size = 0x9000, scoped, tag = 'internal scratch']
  %s0 = inlined_call_operand.vmem [shape: bf16[64,128], index: 0, kind: input, shape index: {}]
  %s1 = inlined_call_operand.vmem [shape: bf16[128,128], index: 1, kind: input, shape index: {}]
  %s2 = inlined_call_operand.vmem [shape: f32[1,128], index: 2, kind: input, shape index: {}]
  %s3 = inlined_call_operand.vmem [shape: bf16[64,128], index: 3, kind: output, shape index: {}]
  %s4 = sld [smem:[#allocation0]]
  $region22: #{rnn_model_forward.3} parent=0
    _
  %s6 = ssub.s32 1, %s4
  %s7 = scalar_select 0, %s6, %s4
  // Predicated region
  $region2: #{rnn_model_forward.3} parent=0 // pred_check
    _
  $region3: #{rnn_model_forward.3} parent=0 // pred_check_branch
    %9 = sbr.rel (0) target = $region5
  $region4: #{rnn_model_forward.3} parent=0 // pred_region
    _
  $region5: #{rnn_model_forward.3} parent=0 // pred_fallthru
    _
  // Predicated region
  $region6: #{rnn_model_forward.3} parent=0 // pred_check
    _
  $region7: #{rnn_model_forward.3} parent=0 // pred_check_branch
    %11 = sbr.rel (0) target = $region9
  $region8: #{rnn_model_forward.3} parent=0 // pred_region
    _
  $region9: #{rnn_model_forward.3} parent=0 // pred_fallthru
    _
  // Predicated region
  $region10: #{rnn_model_forward.3} parent=0 // pred_check
    _
  $region11: #{rnn_model_forward.3} parent=0 // pred_check_branch
    %13 = sbr.rel (0) target = $region13
  $region12: #{rnn_model_forward.3} parent=0 // pred_region
    _
  $region13: #{rnn_model_forward.3} parent=0 // pred_fallthru
    _
  %v14 = vld [vmem:[%s0] sm:$0xf]
  %v15 = vld [vmem:[%s0 + $0x4] sm:$0xf]
  %v16 = vld [vmem:[%s0 + $0x8] sm:$0xf]
  %v17 = vld [vmem:[%s0 + $0xc] sm:$0xf]
  %v18 = vld [vmem:[%s0 + $0x10] sm:$0xf]
  %v19 = vld [vmem:[%s0 + $0x14] sm:$0xf]
  %v20 = vld [vmem:[%s0 + $0x18] sm:$0xf]
  %v21 = vld [vmem:[%s0 + $0x1c] sm:$0xf]
  %v22 = vld [vmem:[%s1] sm:$0xf]
  %v23 = vld [vmem:[%s1 + $0x4] sm:$0xf]
  %v24 = vld [vmem:[%s1 + $0x8] sm:$0xf]
  %v25 = vld [vmem:[%s1 + $0xc] sm:$0xf]
  %v26 = vld [vmem:[%s1 + $0x10] sm:$0xf]
  %v27 = vld [vmem:[%s1 + $0x14] sm:$0xf]
  %v28 = vld [vmem:[%s1 + $0x18] sm:$0xf]
  %v29 = vld [vmem:[%s1 + $0x1c] sm:$0xf]
  %v30 = vld [vmem:[%s1 + $0x20] sm:$0xf]
  %v31 = vld [vmem:[%s1 + $0x24] sm:$0xf]
  %v32 = vld [vmem:[%s1 + $0x28] sm:$0xf]
  %v33 = vld [vmem:[%s1 + $0x2c] sm:$0xf]
  %v34 = vld [vmem:[%s1 + $0x30] sm:$0xf]
  %v35 = vld [vmem:[%s1 + $0x34] sm:$0xf]
  %v36 = vld [vmem:[%s1 + $0x38] sm:$0xf]
  %v37 = vld [vmem:[%s1 + $0x3c] sm:$0xf]
  %v38 = vld [vmem:[%s2] sm:$0x1]
  %v40 = vperm.slane %v38, 0
  %v50 = vunpack.c.l.b16 %v14
  %v51 = vunpack.c.l.b16 %v15
  %v52 = vunpack.c.l.b16 %v16
  %v53 = vunpack.c.l.b16 %v17
  %v54 = vunpack.c.l.b16 %v18
  %v55 = vunpack.c.l.b16 %v19
  %v56 = vunpack.c.l.b16 %v20
  %v57 = vunpack.c.l.b16 %v21
  %v58 = vpack.c.b16 %v51, %v50
  %v59 = vpack.c.b16 %v53, %v52
  %v60 = vpack.c.b16 %v55, %v54
  %v61 = vpack.c.b16 %v57, %v56
  %v82 = vunpack.c.l.b16 %v22
  %v83 = vunpack.c.l.b16 %v23
  %v84 = vunpack.c.l.b16 %v24
  %v85 = vunpack.c.l.b16 %v25
  %v86 = vunpack.c.l.b16 %v26
  %v87 = vunpack.c.l.b16 %v27
  %v88 = vunpack.c.l.b16 %v28
  %v89 = vunpack.c.l.b16 %v29
  %v90 = vunpack.c.l.b16 %v30
  %v91 = vunpack.c.l.b16 %v31
  %v92 = vunpack.c.l.b16 %v32
  %v93 = vunpack.c.l.b16 %v33
  %v94 = vunpack.c.l.b16 %v34
  %v95 = vunpack.c.l.b16 %v35
  %v96 = vunpack.c.l.b16 %v36
  %v97 = vunpack.c.l.b16 %v37
  %v98 = vpack.c.b16 %v83, %v82
  %v99 = vpack.c.b16 %v85, %v84
  %v100 = vpack.c.b16 %v87, %v86
  %v101 = vpack.c.b16 %v89, %v88
  %v102 = vpack.c.b16 %v91, %v90
  %v103 = vpack.c.b16 %v93, %v92
  %v104 = vpack.c.b16 %v95, %v94
  %v105 = vpack.c.b16 %v97, %v96
  %114 = vmatpush.bf16.msra.mxu0 %v105
  %115 = vmatpush.bf16.msra.mxu0 %v104
  %116 = vmatpush.bf16.msra.mxu0 %v103
  %117 = vmatpush.bf16.msra.mxu0 %v102
  %118 = vmatpush.bf16.msra.mxu0 %v101
  %119 = vmatpush.bf16.msra.mxu0 %v100
  %120 = vmatpush.bf16.msra.mxu0 %v99
  %121 = vmatpush.bf16.msra.mxu0 %v98
  %122 = vmatmul.bf16.gmra.mxu0 %v58
  %v123 = vpop.f32.mrf.mxu0
  %v124 = vadd.f32 %v40, %v123
  %v125 = vpop.f32.mrf.mxu0
  %v126 = vadd.f32 %v40, %v125
  %127 = vmatmul.bf16.gmra.mxu0 %v59
  %v128 = vpop.f32.mrf.mxu0
  %v129 = vadd.f32 %v40, %v128
  %v130 = vpop.f32.mrf.mxu0
  %v131 = vadd.f32 %v40, %v130
  %132 = vmatmul.bf16.gmra.mxu0 %v60
  %v133 = vpop.f32.mrf.mxu0
  %v134 = vadd.f32 %v40, %v133
  %v135 = vpop.f32.mrf.mxu0
  %v136 = vadd.f32 %v40, %v135
  %137 = vmatmul.bf16.gmra.mxu0 %v61
  %v138 = vpop.f32.mrf.mxu0
  %v139 = vadd.f32 %v40, %v138
  %v140 = vpop.f32.mrf.mxu0
  %v141 = vadd.f32 %v40, %v140
  %142 = vdwg.mxu0
  %v143 = vpack.c.bf16 %v124, %v124
  %v144 = vpack.c.bf16 %v126, %v126
  %v145 = vpack.c.bf16 %v129, %v129
  %v146 = vpack.c.bf16 %v131, %v131
  %v147 = vpack.c.bf16 %v134, %v134
  %v148 = vpack.c.bf16 %v136, %v136
  %v149 = vpack.c.bf16 %v139, %v139
  %v150 = vpack.c.bf16 %v141, %v141
  %151 = vst [vmem:[%s3] sm:$0xf] %v143
  %152 = vst [vmem:[%s3 + $0x4] sm:$0xf] %v144
  %153 = vst [vmem:[%s3 + $0x8] sm:$0xf] %v145
  %154 = vst [vmem:[%s3 + $0xc] sm:$0xf] %v146
  %155 = vst [vmem:[%s3 + $0x10] sm:$0xf] %v147
  %156 = vst [vmem:[%s3 + $0x14] sm:$0xf] %v148
  %157 = vst [vmem:[%s3 + $0x18] sm:$0xf] %v149
  %158 = vst [vmem:[%s3 + $0x1c] sm:$0xf] %v150
  // Predicated region
  $region14: #{rnn_model_forward.3} parent=0 // pred_check
    _
  $region15: #{rnn_model_forward.3} parent=0 // pred_check_branch
    %160 = sbr.rel (0) target = $region17
  $region16: #{rnn_model_forward.3} parent=0 // pred_region
    _
  $region17: #{rnn_model_forward.3} parent=0 // pred_fallthru
    _
  // Predicated region
  $region18: #{rnn_model_forward.3} parent=0 // pred_check
    _
  $region19: #{rnn_model_forward.3} parent=0 // pred_check_branch
    %162 = sbr.rel (0) target = $region21
  $region20: #{rnn_model_forward.3} parent=0 // pred_region
    _
  $region21: #{rnn_model_forward.3} parent=0 // pred_fallthru
    _

</llo_original>
